<compile_context>
chip_gen: v5e
topology: v5e:2x2
jax: 0.10.0
libtpu: 0.0.40
codegen_flags: <defaults>
</compile_context>

<pallas_src>
import functools

import jax
import jax.numpy as jnp
from jax.experimental import pallas as pl
from jax.experimental.pallas import tpu as pltpu

LANE = 128  # TPU lane width — pad the output feature dim to a multiple of this.


def dqn_kernel(x_ref, w1_ref, b1_ref, w2_ref, b2_ref, w3_ref, b3_ref, out_ref):
    # fc1 + ReLU  (bf16 MXU inputs, f32 accumulation, f32 elementwise)
    h1 = jnp.dot(x_ref[...], w1_ref[...], preferred_element_type=jnp.float32)
    h1 = jnp.maximum(h1 + b1_ref[...], 0.0).astype(jnp.bfloat16)
    # fc2 + ReLU
    h2 = jnp.dot(h1, w2_ref[...], preferred_element_type=jnp.float32)
    h2 = jnp.maximum(h2 + b2_ref[...], 0.0).astype(jnp.bfloat16)
    # fc3 (no activation); output columns beyond action_dim are zero-padded.
    out = jnp.dot(h2, w3_ref[...], preferred_element_type=jnp.float32)
    out_ref[...] = (out + b3_ref[...]).astype(out_ref.dtype)


@functools.partial(jax.jit, static_argnames=("block_batch",))
def dqn_forward(x, params, *, block_batch=512):
    """x: (B, state_dim) f32.  params: f32 (w1, b1, w2, b2, w3, b3) with
    weights stored as (in_features, out_features).  Returns (B, action_dim) f32."""
    w1, b1, w2, b2, w3, b3 = params
    B, state_dim = x.shape
    hidden = w1.shape[1]
    action_dim = w3.shape[1]

    # --- pad the action (output lane) dimension to a multiple of 128 --------
    a_pad = max(LANE, ((action_dim + LANE - 1) // LANE) * LANE)
    w3p = jnp.zeros((hidden, a_pad), w3.dtype).at[:, :action_dim].set(w3)
    b3p = jnp.zeros((1, a_pad), b3.dtype).at[:, :action_dim].set(b3)

    # --- bf16 operands for the MXU (accumulation stays f32 in-kernel) -------
    xb = x.astype(jnp.bfloat16)
    w1b = w1.astype(jnp.bfloat16)
    w2b = w2.astype(jnp.bfloat16)
    w3b = w3p.astype(jnp.bfloat16)

    # --- choose a batch tile and pad the batch up to a multiple of it -------
    if B >= block_batch:
        tb = block_batch
    else:
        tb = ((B + 7) // 8) * 8          # sublane-aligned single tile
    b_padded = pl.cdiv(B, tb) * tb
    if b_padded != B:
        xb = jnp.pad(xb, ((0, b_padded - B), (0, 0)))
    grid = (b_padded // tb,)

    def batched(shape):
        # batch-tiled arrays: block index follows the grid along axis 0
        return pl.BlockSpec(shape, lambda i: (0, 0) if shape[0] != tb else (i, 0))

    x_spec = pl.BlockSpec((tb, state_dim), lambda i: (i, 0))
    out_spec = pl.BlockSpec((tb, a_pad), lambda i: (i, 0))
    # weights/biases: constant block index -> fetched once, resident in VMEM
    const = lambda shape: pl.BlockSpec(shape, lambda i: (0, 0))

    out_padded = pl.pallas_call(
        dqn_kernel,
        out_shape=jax.ShapeDtypeStruct((b_padded, a_pad), jnp.float32),
        grid=grid,
        in_specs=[
            x_spec,
            const((state_dim, hidden)),
            const((1, hidden)),
            const((hidden, hidden)),
            const((1, hidden)),
            const((hidden, a_pad)),
            const((1, a_pad)),
        ],
        out_specs=out_spec,
        compiler_params=pltpu.CompilerParams(
            dimension_semantics=("parallel",),
            vmem_limit_bytes=64 * 1024 * 1024,
        ),
    )(xb, w1b, b1, w2b, b2, w3b, b3p)

    return out_padded[:B, :action_dim]


def init_params(key, state_dim, action_dim, hidden=128):
    # Deterministic synthetic init (shapes match the DQN module's nn.Linear layers,
    # weights stored transposed as (in_features, out_features)).
    k1, k2, k3, k4, k5, k6 = jax.random.split(key, 6)
    s1 = 1.0 / jnp.sqrt(state_dim)
    s2 = 1.0 / jnp.sqrt(hidden)
    w1 = jax.random.uniform(k1, (state_dim, hidden), jnp.float32, -s1, s1)
    b1 = jax.random.uniform(k2, (1, hidden), jnp.float32, -s1, s1)
    w2 = jax.random.uniform(k3, (hidden, hidden), jnp.float32, -s2, s2)
    b2 = jax.random.uniform(k4, (1, hidden), jnp.float32, -s2, s2)
    w3 = jax.random.uniform(k5, (hidden, action_dim), jnp.float32, -s2, s2)
    b3 = jax.random.uniform(k6, (1, action_dim), jnp.float32, -s2, s2)
    return (w1, b1, w2, b2, w3, b3)


def dqn_reference(x, params):
    w1, b1, w2, b2, w3, b3 = params
    h1 = jnp.maximum(x @ w1 + b1, 0.0)
    h2 = jnp.maximum(h1 @ w2 + b2, 0.0)
    return h2 @ w3 + b3


if __name__ == "__main__":
    batch = 8
    state_dim = 32
    action_dim = 8

    key = jax.random.PRNGKey(0)
    kx, kp = jax.random.split(key)
    x = jax.random.normal(kx, (batch, state_dim), jnp.float32)
    params = init_params(kp, state_dim, action_dim)

    out = dqn_forward(x, params)
    out = jax.block_until_ready(out)

    ref = dqn_reference(x, params)  # f32 reference; kernel uses bf16 MXU inputs
    assert out.shape == (batch, action_dim)
    assert jnp.allclose(out, ref, atol=5e-2, rtol=5e-2), (
        float(jnp.max(jnp.abs(out - ref))))

    print("KERNEL_OK")
</pallas_src>

<mosaic_0001>
module attributes {stable_mosaic.version = 11 : i64} {
  func.func @dqn_kernel(%arg0: i32, %arg1: memref<8x32xbf16, #tpu.memory_space<vmem>>, %arg2: memref<32x128xbf16, #tpu.memory_space<vmem>>, %arg3: memref<1x128xf32, #tpu.memory_space<vmem>>, %arg4: memref<128x128xbf16, #tpu.memory_space<vmem>>, %arg5: memref<1x128xf32, #tpu.memory_space<vmem>>, %arg6: memref<128x128xbf16, #tpu.memory_space<vmem>>, %arg7: memref<1x128xf32, #tpu.memory_space<vmem>>, %arg8: memref<8x128xf32, #tpu.memory_space<vmem>>) attributes {dimension_semantics = [#tpu.dimension_semantics<parallel>], iteration_bounds = array<i64: 1>, scalar_prefetch = 0 : i64, scratch_operands = 0 : i64, tpu.core_type = #tpu.core_type<tc>, window_params = [{transform_indices = @transform_0, window_bounds = array<i64: 8, 32>}, {pipeline_mode = #tpu.pipeline_mode<synchronous>, transform_indices = @transform_1, window_bounds = array<i64: 32, 128>}, {pipeline_mode = #tpu.pipeline_mode<synchronous>, transform_indices = @transform_2, window_bounds = array<i64: 1, 128>}, {pipeline_mode = #tpu.pipeline_mode<synchronous>, transform_indices = @transform_3, window_bounds = array<i64: 128, 128>}, {pipeline_mode = #tpu.pipeline_mode<synchronous>, transform_indices = @transform_4, window_bounds = array<i64: 1, 128>}, {pipeline_mode = #tpu.pipeline_mode<synchronous>, transform_indices = @transform_5, window_bounds = array<i64: 128, 128>}, {pipeline_mode = #tpu.pipeline_mode<synchronous>, transform_indices = @transform_6, window_bounds = array<i64: 1, 128>}, {transform_indices = @transform_7, window_bounds = array<i64: 8, 128>}]} {
    %c0 = arith.constant 0 : index
    %c0_0 = arith.constant 0 : index
    %0 = vector.load %arg1[%c0, %c0_0] : memref<8x32xbf16, #tpu.memory_space<vmem>>, vector<8x32xbf16>
    %c0_1 = arith.constant 0 : index
    %c0_2 = arith.constant 0 : index
    %1 = vector.load %arg2[%c0_1, %c0_2] : memref<32x128xbf16, #tpu.memory_space<vmem>>, vector<32x128xbf16>
    %cst = arith.constant dense<0.000000e+00> : vector<8x128xf32>
    %2 = tpu.matmul %0, %1, %cst {dimension_numbers = #tpu.dot_dimension_numbers<[1], [0], [0], [1], [0, 0, 1, 1], [], []>} : vector<8x32xbf16>, vector<32x128xbf16>, vector<8x128xf32> -> vector<8x128xf32>
    %c0_3 = arith.constant 0 : index
    %c0_4 = arith.constant 0 : index
    %3 = vector.load %arg3[%c0_3, %c0_4] : memref<1x128xf32, #tpu.memory_space<vmem>>, vector<1x128xf32>
    %4 = vector.broadcast %3 : vector<1x128xf32> to vector<8x128xf32>
    %5 = arith.addf %2, %4 : vector<8x128xf32>
    %cst_5 = arith.constant 0.000000e+00 : f32
    %6 = vector.broadcast %cst_5 : f32 to vector<8x128xf32>
    %7 = arith.maximumf %5, %6 : vector<8x128xf32>
    %8 = arith.truncf %7 : vector<8x128xf32> to vector<8x128xbf16>
    %c0_6 = arith.constant 0 : index
    %c0_7 = arith.constant 0 : index
    %9 = vector.load %arg4[%c0_6, %c0_7] : memref<128x128xbf16, #tpu.memory_space<vmem>>, vector<128x128xbf16>
    %cst_8 = arith.constant dense<0.000000e+00> : vector<8x128xf32>
    %10 = tpu.matmul %8, %9, %cst_8 {dimension_numbers = #tpu.dot_dimension_numbers<[1], [0], [0], [1], [0, 0, 1, 1], [], []>} : vector<8x128xbf16>, vector<128x128xbf16>, vector<8x128xf32> -> vector<8x128xf32>
    %c0_9 = arith.constant 0 : index
    %c0_10 = arith.constant 0 : index
    %11 = vector.load %arg5[%c0_9, %c0_10] : memref<1x128xf32, #tpu.memory_space<vmem>>, vector<1x128xf32>
    %12 = vector.broadcast %11 : vector<1x128xf32> to vector<8x128xf32>
    %13 = arith.addf %10, %12 : vector<8x128xf32>
    %cst_11 = arith.constant 0.000000e+00 : f32
    %14 = vector.broadcast %cst_11 : f32 to vector<8x128xf32>
    %15 = arith.maximumf %13, %14 : vector<8x128xf32>
    %16 = arith.truncf %15 : vector<8x128xf32> to vector<8x128xbf16>
    %c0_12 = arith.constant 0 : index
    %c0_13 = arith.constant 0 : index
    %17 = vector.load %arg6[%c0_12, %c0_13] : memref<128x128xbf16, #tpu.memory_space<vmem>>, vector<128x128xbf16>
    %cst_14 = arith.constant dense<0.000000e+00> : vector<8x128xf32>
    %18 = tpu.matmul %16, %17, %cst_14 {dimension_numbers = #tpu.dot_dimension_numbers<[1], [0], [0], [1], [0, 0, 1, 1], [], []>} : vector<8x128xbf16>, vector<128x128xbf16>, vector<8x128xf32> -> vector<8x128xf32>
    %c0_15 = arith.constant 0 : index
    %c0_16 = arith.constant 0 : index
    %19 = vector.load %arg7[%c0_15, %c0_16] : memref<1x128xf32, #tpu.memory_space<vmem>>, vector<1x128xf32>
    %20 = vector.broadcast %19 : vector<1x128xf32> to vector<8x128xf32>
    %21 = arith.addf %18, %20 : vector<8x128xf32>
    %c0_17 = arith.constant 0 : index
    %c0_18 = arith.constant 0 : index
    %22 = vector.load %arg8[%c0_17, %c0_18] : memref<8x128xf32, #tpu.memory_space<vmem>>, vector<8x128xf32>
    tpu.vector_store %arg8[%c0_17, %c0_18], %21 {strides = array<i32>} : memref<8x128xf32, #tpu.memory_space<vmem>>, vector<8x128xf32>,
    return
  }
  func.func @transform_0(%arg0: i32) -> (i32, i32) {
    %c0_i32 = arith.constant 0 : i32
    %c0_i32_0 = arith.constant 0 : i32
    return %arg0, %c0_i32 : i32, i32
  }
  func.func @transform_1(%arg0: i32) -> (i32, i32) {
    %c0_i32 = arith.constant 0 : i32
    %c0_i32_0 = arith.constant 0 : i32
    %c0_i32_1 = arith.constant 0 : i32
    return %c0_i32, %c0_i32_0 : i32, i32
  }
  func.func @transform_2(%arg0: i32) -> (i32, i32) {
    %c0_i32 = arith.constant 0 : i32
    %c0_i32_0 = arith.constant 0 : i32
    %c0_i32_1 = arith.constant 0 : i32
    return %c0_i32, %c0_i32_0 : i32, i32
  }
  func.func @transform_3(%arg0: i32) -> (i32, i32) {
    %c0_i32 = arith.constant 0 : i32
    %c0_i32_0 = arith.constant 0 : i32
    %c0_i32_1 = arith.constant 0 : i32
    return %c0_i32, %c0_i32_0 : i32, i32
  }
  func.func @transform_4(%arg0: i32) -> (i32, i32) {
    %c0_i32 = arith.constant 0 : i32
    %c0_i32_0 = arith.constant 0 : i32
    %c0_i32_1 = arith.constant 0 : i32
    return %c0_i32, %c0_i32_0 : i32, i32
  }
  func.func @transform_5(%arg0: i32) -> (i32, i32) {
    %c0_i32 = arith.constant 0 : i32
    %c0_i32_0 = arith.constant 0 : i32
    %c0_i32_1 = arith.constant 0 : i32
    return %c0_i32, %c0_i32_0 : i32, i32
  }
  func.func @transform_6(%arg0: i32) -> (i32, i32) {
    %c0_i32 = arith.constant 0 : i32
    %c0_i32_0 = arith.constant 0 : i32
    %c0_i32_1 = arith.constant 0 : i32
    return %c0_i32, %c0_i32_0 : i32, i32
  }
  func.func @transform_7(%arg0: i32) -> (i32, i32) {
    %c0_i32 = arith.constant 0 : i32
    %c0_i32_0 = arith.constant 0 : i32
    return %arg0, %c0_i32 : i32, i32
  }
}

</mosaic_0001>

<llo_original>
// kernel: dqn_forward.1
$region0: #{dqn_forward.1}
  #allocation0 [shape = 'u32[]', space=smem, size = 0x4, offset = 0x4, fixed_abs, tag = 'smem constant byte address 0x4 - core index']
  #allocation1 [shape = 'u32[72,128]{1,0:T(1,128)}', space=vmem, size = 0x9000, scoped, tag = 'internal scratch']
  %s0 = inlined_call_operand.vmem [shape: bf16[8,32], index: 0, kind: input, shape index: {}]
  %s1 = inlined_call_operand.vmem [shape: bf16[32,128], index: 1, kind: input, shape index: {}]
  %s2 = inlined_call_operand.vmem [shape: f32[1,128], index: 2, kind: input, shape index: {}]
  %s3 = inlined_call_operand.vmem [shape: bf16[128,128], index: 3, kind: input, shape index: {}]
  %s4 = inlined_call_operand.vmem [shape: f32[1,128], index: 4, kind: input, shape index: {}]
  %s5 = inlined_call_operand.vmem [shape: bf16[128,128], index: 5, kind: input, shape index: {}]
  %s6 = inlined_call_operand.vmem [shape: f32[1,128], index: 6, kind: input, shape index: {}]
  %s7 = inlined_call_operand.hbm [shape: f32[8,128], index: 7, kind: output, shape index: {}]
  %s8 = sld [smem:[#allocation0]]
  $region38: #{dqn_forward.1} parent=0
    _
  %s10 = ssub.s32 1, %s8
  %s11 = scalar_select 0, %s10, %s8
  $region1: #{dqn_forward.1} parent=0
    #allocation2 [shape = 'u8[4096]{0}', space=vmem, size = 0x1000, scoped, tag = 'output window, operand 0, single buffered']
    #allocation3 [shape = 's32[1]{0}', space=sflag, size = 0x4, scoped, tag = 'scoped memory for dqn_forward.1']
    %12 = vsyncpa [#allocation3], 0
    // Predicated region
    $region2: #{dqn_forward.1} parent=1 // pred_check
      _
    $region3: #{dqn_forward.1} parent=1 // pred_check_branch
      %14 = sbr.rel (0) target = $region5
    $region4: #{dqn_forward.1} parent=1 // pred_region
      _
    $region5: #{dqn_forward.1} parent=1 // pred_fallthru
      _
    // Predicated region
    $region6: #{dqn_forward.1} parent=1 // pred_check
      _
    $region7: #{dqn_forward.1} parent=1 // pred_check_branch
      %16 = sbr.rel (0) target = $region9
    $region8: #{dqn_forward.1} parent=1 // pred_region
      _
    $region9: #{dqn_forward.1} parent=1 // pred_fallthru
      _
    // Predicated region
    $region10: #{dqn_forward.1} parent=1 // pred_check
      _
    $region11: #{dqn_forward.1} parent=1 // pred_check_branch
      %18 = sbr.rel (0) target = $region13
    $region12: #{dqn_forward.1} parent=1 // pred_region
      _
    $region13: #{dqn_forward.1} parent=1 // pred_fallthru
      _
    // Predicated region
    $region14: #{dqn_forward.1} parent=1 // pred_check
      _
    $region15: #{dqn_forward.1} parent=1 // pred_check_branch
      %20 = sbr.rel (0) target = $region17
    $region16: #{dqn_forward.1} parent=1 // pred_region
      _
    $region17: #{dqn_forward.1} parent=1 // pred_fallthru
      _
    // Predicated region
    $region18: #{dqn_forward.1} parent=1 // pred_check
      _
    $region19: #{dqn_forward.1} parent=1 // pred_check_branch
      %22 = sbr.rel (0) target = $region21
    $region20: #{dqn_forward.1} parent=1 // pred_region
      _
    $region21: #{dqn_forward.1} parent=1 // pred_fallthru
      _
    // Predicated region
    $region22: #{dqn_forward.1} parent=1 // pred_check
      _
    $region23: #{dqn_forward.1} parent=1 // pred_check_branch
      %24 = sbr.rel (0) target = $region25
    $region24: #{dqn_forward.1} parent=1 // pred_region
      _
    $region25: #{dqn_forward.1} parent=1 // pred_fallthru
      _
    // Predicated region
    $region26: #{dqn_forward.1} parent=1 // pred_check
      _
    $region27: #{dqn_forward.1} parent=1 // pred_check_branch
      %26 = sbr.rel (0) target = $region29
    $region28: #{dqn_forward.1} parent=1 // pred_region
      _
    $region29: #{dqn_forward.1} parent=1 // pred_fallthru
      _
    %v28 = vld [vmem:[%s0] sm:$0xf]
    %v29 = vld [vmem:[%s1] sm:$0xf]
    %v30 = vld [vmem:[%s1 + $0x4] sm:$0xf]
    %v31 = vld [vmem:[%s1 + $0x8] sm:$0xf]
    %v32 = vld [vmem:[%s1 + $0xc] sm:$0xf]
    %v33 = vld [vmem:[%s2] sm:$0x1]
    %v35 = vperm.slane %v33, 0
    %v41 = vunpack.c.l.b16 %v29
    %v42 = vunpack.c.l.b16 %v30
    %v43 = vunpack.c.l.b16 %v31
    %v44 = vunpack.c.l.b16 %v32
    %v45 = vpack.c.b16 %v42, %v41
    %v46 = vpack.c.b16 %v44, %v43
    %vm49 = vcmask 261120
    %v51 = vsel %vm49, %v28, 0
    %53 = vmatpush.bf16.msra.mxu0 0
    %54 = vmatpush.bf16.msra.mxu0 0
    %55 = vmatpush.bf16.msra.mxu0 0
    %56 = vmatpush.bf16.msra.mxu0 0
    %57 = vmatpush.bf16.msra.mxu0 0
    %58 = vmatpush.bf16.msra.mxu0 0
    %59 = vmatpush.bf16.msra.mxu0 %v46
    %60 = vmatpush.bf16.msra.mxu0 %v45
    %61 = vmatmul.bf16.gmra.mxu0 %v51
    %v62 = vpop.f32.mrf.mxu0
    %v63 = vadd.f32 %v35, %v62
    %v64 = vpop.f32.mrf.mxu0
    %65 = vdwg.mxu0
    %v66 = vmax.f32 %v63, 0.0
    %v67 = vpack.c.bf16 %v66, %v66
    %v68 = vld [vmem:[%s3] sm:$0xf]
    %v69 = vld [vmem:[%s3 + $0x4] sm:$0xf]
    %v70 = vld [vmem:[%s3 + $0x8] sm:$0xf]
    %v71 = vld [vmem:[%s3 + $0xc] sm:$0xf]
    %v72 = vld [vmem:[%s3 + $0x10] sm:$0xf]
    %v73 = vld [vmem:[%s3 + $0x14] sm:$0xf]
    %v74 = vld [vmem:[%s3 + $0x18] sm:$0xf]
    %v75 = vld [vmem:[%s3 + $0x1c] sm:$0xf]
    %v76 = vld [vmem:[%s3 + $0x20] sm:$0xf]
    %v77 = vld [vmem:[%s3 + $0x24] sm:$0xf]
    %v78 = vld [vmem:[%s3 + $0x28] sm:$0xf]
    %v79 = vld [vmem:[%s3 + $0x2c] sm:$0xf]
    %v80 = vld [vmem:[%s3 + $0x30] sm:$0xf]
    %v81 = vld [vmem:[%s3 + $0x34] sm:$0xf]
    %v82 = vld [vmem:[%s3 + $0x38] sm:$0xf]
    %v83 = vld [vmem:[%s3 + $0x3c] sm:$0xf]
    %v84 = vld [vmem:[%s4] sm:$0x1]
    %v86 = vperm.slane %v84, 0
    %v104 = vunpack.c.l.b16 %v68
    %v105 = vunpack.c.l.b16 %v69
    %v106 = vunpack.c.l.b16 %v70
    %v107 = vunpack.c.l.b16 %v71
    %v108 = vunpack.c.l.b16 %v72
    %v109 = vunpack.c.l.b16 %v73
    %v110 = vunpack.c.l.b16 %v74
    %v111 = vunpack.c.l.b16 %v75
    %v112 = vunpack.c.l.b16 %v76
    %v113 = vunpack.c.l.b16 %v77
    %v114 = vunpack.c.l.b16 %v78
    %v115 = vunpack.c.l.b16 %v79
    %v116 = vunpack.c.l.b16 %v80
    %v117 = vunpack.c.l.b16 %v81
    %v118 = vunpack.c.l.b16 %v82
    %v119 = vunpack.c.l.b16 %v83
    %v120 = vpack.c.b16 %v105, %v104
    %v121 = vpack.c.b16 %v107, %v106
    %v122 = vpack.c.b16 %v109, %v108
    %v123 = vpack.c.b16 %v111, %v110
    %v124 = vpack.c.b16 %v113, %v112
    %v125 = vpack.c.b16 %v115, %v114
    %v126 = vpack.c.b16 %v117, %v116
    %v127 = vpack.c.b16 %v119, %v118
    %136 = vmatpush.bf16.msra.mxu0 %v127
    %137 = vmatpush.bf16.msra.mxu0 %v126
    %138 = vmatpush.bf16.msra.mxu0 %v125
    %139 = vmatpush.bf16.msra.mxu0 %v124
    %140 = vmatpush.bf16.msra.mxu0 %v123
    %141 = vmatpush.bf16.msra.mxu0 %v122
    %142 = vmatpush.bf16.msra.mxu0 %v121
    %143 = vmatpush.bf16.msra.mxu0 %v120
    %144 = vmatmul.bf16.gmra.mxu0 %v67
    %v145 = vpop.f32.mrf.mxu0
    %v146 = vadd.f32 %v86, %v145
    %v147 = vpop.f32.mrf.mxu0
    %148 = vdwg.mxu0
    %v149 = vmax.f32 %v146, 0.0
    %v150 = vpack.c.bf16 %v149, %v149
    %v151 = vld [vmem:[%s5] sm:$0xf]
    %v152 = vld [vmem:[%s5 + $0x4] sm:$0xf]
    %v153 = vld [vmem:[%s5 + $0x8] sm:$0xf]
    %v154 = vld [vmem:[%s5 + $0xc] sm:$0xf]
    %v155 = vld [vmem:[%s5 + $0x10] sm:$0xf]
    %v156 = vld [vmem:[%s5 + $0x14] sm:$0xf]
    %v157 = vld [vmem:[%s5 + $0x18] sm:$0xf]
    %v158 = vld [vmem:[%s5 + $0x1c] sm:$0xf]
    %v159 = vld [vmem:[%s5 + $0x20] sm:$0xf]
    %v160 = vld [vmem:[%s5 + $0x24] sm:$0xf]
    %v161 = vld [vmem:[%s5 + $0x28] sm:$0xf]
    %v162 = vld [vmem:[%s5 + $0x2c] sm:$0xf]
    %v163 = vld [vmem:[%s5 + $0x30] sm:$0xf]
    %v164 = vld [vmem:[%s5 + $0x34] sm:$0xf]
    %v165 = vld [vmem:[%s5 + $0x38] sm:$0xf]
    %v166 = vld [vmem:[%s5 + $0x3c] sm:$0xf]
    %v167 = vld [vmem:[%s6] sm:$0x1]
    %v169 = vperm.slane %v167, 0
    %v187 = vunpack.c.l.b16 %v151
    %v188 = vunpack.c.l.b16 %v152
    %v189 = vunpack.c.l.b16 %v153
    %v190 = vunpack.c.l.b16 %v154
    %v191 = vunpack.c.l.b16 %v155
    %v192 = vunpack.c.l.b16 %v156
    %v193 = vunpack.c.l.b16 %v157
    %v194 = vunpack.c.l.b16 %v158
    %v195 = vunpack.c.l.b16 %v159
    %v196 = vunpack.c.l.b16 %v160
    %v197 = vunpack.c.l.b16 %v161
    %v198 = vunpack.c.l.b16 %v162
    %v199 = vunpack.c.l.b16 %v163
    %v200 = vunpack.c.l.b16 %v164
    %v201 = vunpack.c.l.b16 %v165
    %v202 = vunpack.c.l.b16 %v166
    %v203 = vpack.c.b16 %v188, %v187
    %v204 = vpack.c.b16 %v190, %v189
    %v205 = vpack.c.b16 %v192, %v191
    %v206 = vpack.c.b16 %v194, %v193
    %v207 = vpack.c.b16 %v196, %v195
    %v208 = vpack.c.b16 %v198, %v197
    %v209 = vpack.c.b16 %v200, %v199
    %v210 = vpack.c.b16 %v202, %v201
    %219 = vmatpush.bf16.msra.mxu0 %v210
    %220 = vmatpush.bf16.msra.mxu0 %v209
    %221 = vmatpush.bf16.msra.mxu0 %v208
    %222 = vmatpush.bf16.msra.mxu0 %v207
    %223 = vmatpush.bf16.msra.mxu0 %v206
    %224 = vmatpush.bf16.msra.mxu0 %v205
    %225 = vmatpush.bf16.msra.mxu0 %v204
    %226 = vmatpush.bf16.msra.mxu0 %v203
    %227 = vmatmul.bf16.gmra.mxu0 %v150
    %v228 = vpop.f32.mrf.mxu0
    %v229 = vadd.f32 %v169, %v228
    %v230 = vpop.f32.mrf.mxu0
    %231 = vdwg.mxu0
    %232 = vst [vmem:[#allocation2] sm:$0xff] %v229
    // Predicated region
    $region30: #{dqn_forward.1} parent=1 // pred_check
      _
    $region31: #{dqn_forward.1} parent=1 // pred_check_branch
      %234 = sbr.rel (0) target = $region33
    $region32: #{dqn_forward.1} parent=1 // pred_region
      %236 = vsyncadd [#allocation3], 0
      %s238 = sshll.u32 [#allocation2], 4
      %s239 = int_to_ptr.vmem [resolvable:$true] %s238
      %s240 = sshll.u32 %s7, 4
      %s241 = int_to_ptr.hbm [resolvable:$true] %s240
      %243 = dma.vmem_to_hbm [thread:$0]  %s239, 128, %s241, [#allocation3]
    $region33: #{dqn_forward.1} parent=1 // pred_fallthru
      _
    // Predicated region
    $region34: #{dqn_forward.1} parent=1 // pred_check
      _
    $region35: #{dqn_forward.1} parent=1 // pred_check_branch
      %245 = sbr.rel (0) target = $region37
    $region36: #{dqn_forward.1} parent=1 // pred_region
      %247 = dma.done [#allocation3], 128
    $region37: #{dqn_forward.1} parent=1 // pred_fallthru
      _
    %248 = vsyncpa [#allocation3], 1

</llo_original>
